<compile_context>
chip_gen: v7x
topology: tpu7x:2x2x1
jax: 0.10.0
libtpu: 0.0.40
codegen_flags: <defaults>
</compile_context>

<pallas_src>
import functools

import jax
import jax.numpy as jnp
from jax import lax
from jax.experimental import pallas as pl
from jax.experimental.pallas import tpu as pltpu


# ----------------------------------------------------------------------------
# Kernel 1: per-sample weighted cross entropy (streams over batch tiles)
# ----------------------------------------------------------------------------
def _ce_kernel(logits_ref, target_ref, weight_ref, v_ref):
    logits = logits_ref[...].astype(jnp.float32)      # (TN, C)
    tgt = target_ref[...]                             # (TN, 1) int32
    w = weight_ref[...].astype(jnp.float32)           # (1, C)
    tn, c = logits.shape

    # log-softmax along the class (lane) axis
    row_max = jnp.max(logits, axis=-1, keepdims=True)
    shifted = logits - row_max
    lse = jnp.log(jnp.sum(jnp.exp(shifted), axis=-1, keepdims=True))
    logp = shifted - lse                               # (TN, C)

    # fused one-hot pick of (weight * logp): single select + single lane reduce
    class_ids = lax.broadcasted_iota(jnp.int32, (tn, c), 1)
    onehot = class_ids == tgt                          # (TN, C)
    v_ref[...] = -jnp.sum(jnp.where(onehot, w * logp, 0.0),
                          axis=-1, keepdims=True)      # (TN, 1), always >= 0


# ----------------------------------------------------------------------------
# Kernel 2: exact CVaR tail over the lane-dense loss vector (1, N)
# ----------------------------------------------------------------------------
def _cvar_select_kernel(v_ref, out_ref, *, cutoff, inv, surplus, n):
    v = v_ref[...]                                     # (1, N) float32, v >= 0
    # For non-negative floats the raw bit pattern viewed as int32 is order-preserving
    # (weighted CE losses are >= 0, so this holds; -0.0 only maps lower, value-identical).
    key = pltpu.bitcast(v, jnp.int32)                  # (1, N)

    if cutoff == 0:
        # p = [surplus(=1), 0, ..., 0] on the sorted losses -> surplus * max(v)
        t_next = jnp.max(v, axis=-1, keepdims=True)    # (1, 1)
        out_ref[...] = jnp.float32(surplus) * t_next
        return

    # Greedy bitwise binary search for the cutoff-th largest key:
    # thr = max T with count(key >= T) >= cutoff  ==  key of sorted_desc[cutoff-1].
    thr = jnp.zeros((1, 1), jnp.int32)
    for b in range(30, -1, -1):                        # bit 31 (sign) is always 0
        cand = thr | jnp.int32(1 << b)                 # (1, 1)
        cnt = jnp.sum((key >= cand).astype(jnp.int32), axis=-1, keepdims=True)
        thr = jnp.where(cnt >= cutoff, cand, thr)

    gt = key > thr                                     # strictly above the threshold value
    cnt_gt = jnp.sum(gt.astype(jnp.float32), axis=-1, keepdims=True)     # (1, 1)
    sum_gt = jnp.sum(jnp.where(gt, v, 0.0), axis=-1, keepdims=True)      # (1, 1)
    # t = the cutoff-th largest loss value itself (v >= 0, so -1.0 is a safe sentinel)
    t = jnp.max(jnp.where(key <= thr, v, jnp.float32(-1.0)), axis=-1, keepdims=True)

    # sum of the top-`cutoff` losses, exact under ties
    topsum = sum_gt + (jnp.float32(cutoff) - cnt_gt) * t
    loss = jnp.float32(inv) * topsum

    if cutoff < n:
        cnt_ge = jnp.sum((key >= thr).astype(jnp.int32), axis=-1, keepdims=True)
        t_lt = jnp.max(jnp.where(key < thr, v, jnp.float32(-1.0)),
                       axis=-1, keepdims=True)
        # sorted_desc[cutoff]: equals t if ties extend past the cutoff, else next value down
        t_next = jnp.where(cnt_ge > cutoff, t, t_lt)
        loss = loss + jnp.float32(surplus) * t_next

    out_ref[...] = loss


# ----------------------------------------------------------------------------
# Wrapper
# ----------------------------------------------------------------------------
def cvar_dro_loss(logits, target, cls_weights, rho):
    """CVaRDRO.forward(output, target, cls_weights) with loss_type='ce'."""
    N, C = logits.shape
    assert 0.0 < rho <= 1.0
    cutoff = int(rho * N)
    inv = 1.0 / (rho * N)
    surplus = 1.0 - cutoff / (rho * N)

    # Batch tile size: keep roughly 2 MiB of logits per tile (double-buffered by Pallas),
    # multiple of 8 sublanes, or the full batch if it is small.
    bytes_per_row = C * max(int(jnp.dtype(logits.dtype).itemsize), 4)
    tn = min(512, max(1, (2 << 20) // bytes_per_row))
    tn = max(8, (tn // 8) * 8)
    if tn >= N:
        tn = N
    grid_n = pl.cdiv(N, tn)

    # --- Kernel 1: streaming weighted CE over batch tiles ---------------------
    v_col = pl.pallas_call(
        _ce_kernel,
        out_shape=jax.ShapeDtypeStruct((N, 1), jnp.float32),
        grid=(grid_n,),
        in_specs=[
            pl.BlockSpec((tn, C), lambda i: (i, 0)),   # logits (native dtype, no HBM copy)
            pl.BlockSpec((tn, 1), lambda i: (i, 0)),   # targets
            pl.BlockSpec((1, C), lambda i: (0, 0)),    # class weights
        ],
        out_specs=pl.BlockSpec((tn, 1), lambda i: (i, 0)),
        compiler_params=pltpu.CompilerParams(
            dimension_semantics=("parallel",),
            vmem_limit_bytes=32 * 1024 * 1024),
    )(logits,
      target.reshape(N, 1).astype(jnp.int32),
      cls_weights.reshape(1, C).astype(jnp.float32))

    # (N,1) -> (1,N) is a free layout change in HBM; gives a lane-dense vector.
    v_row = v_col.reshape(1, N)

    # --- Kernel 2: exact CVaR selection on the lane-dense loss vector ---------
    out = pl.pallas_call(
        functools.partial(_cvar_select_kernel, cutoff=cutoff, inv=float(inv),
                          surplus=float(surplus), n=N),
        out_shape=jax.ShapeDtypeStruct((1, 1), jnp.float32),
        grid=(1,),
        in_specs=[pl.BlockSpec((1, N), lambda i: (0, 0))],
        out_specs=pl.BlockSpec((1, 1), lambda i: (0, 0)),
        compiler_params=pltpu.CompilerParams(
            dimension_semantics=("arbitrary",)),
    )(v_row)
    return out[0, 0]


# ----------------------------------------------------------------------------
# Pure-JAX reference (F.cross_entropy + fast-dro CVaR best response)
# ----------------------------------------------------------------------------
def _reference(logits, target, cls_weights, rho):
    logp = jax.nn.log_softmax(logits.astype(jnp.float32), axis=-1)
    picked = jnp.take_along_axis(logp, target[:, None], axis=1)[:, 0]
    v = -cls_weights[target] * picked
    m = v.shape[0]
    cutoff = int(rho * m)
    inv = 1.0 / (rho * m)
    surplus = 1.0 - cutoff / (rho * m)
    vs = jnp.sort(v)[::-1]
    p = jnp.zeros((m,), jnp.float32).at[:cutoff].set(inv)
    if cutoff < m:
        p = p.at[cutoff].set(surplus)
    return jnp.dot(p, vs)


if __name__ == "__main__":
    key = jax.random.PRNGKey(0)
    N, C = 8, 16        # batch=8 samples, 16 classes

    k1, k2, k3 = jax.random.split(key, 3)
    logits = 2.0 * jax.random.normal(k1, (N, C), dtype=jnp.float32)        # "output"
    target = jax.random.randint(k2, (N,), 0, C, dtype=jnp.int32)           # "target"
    cls_weights = jax.random.uniform(k3, (C,), jnp.float32, 0.5, 1.5)      # "cls_weights"

    # rho=0.3 (generic), rho=1.0 (cutoff == N), rho=0.05 (cutoff == 0) edge cases
    for rho in (0.3, 1.0, 0.05):
        out = jax.block_until_ready(cvar_dro_loss(logits, target, cls_weights, rho))
        ref = jax.block_until_ready(_reference(logits, target, cls_weights, rho))
        assert abs(float(out) - float(ref)) < 1e-4, (rho, float(out), float(ref))
    print("KERNEL_OK")
</pallas_src>

<mosaic_0001>
module attributes {stable_mosaic.version = 11 : i64} {
  func.func @_ce_kernel(%arg0: i32, %arg1: memref<8x16xf32, #tpu.memory_space<vmem>>, %arg2: memref<8x1xi32, #tpu.memory_space<vmem>>, %arg3: memref<1x16xf32, #tpu.memory_space<vmem>>, %arg4: memref<8x1xf32, #tpu.memory_space<vmem>>) attributes {dimension_semantics = [#tpu.dimension_semantics<parallel>], iteration_bounds = array<i64: 1>, scalar_prefetch = 0 : i64, scratch_operands = 0 : i64, tpu.core_type = #tpu.core_type<tc>, window_params = [{transform_indices = @transform_0, window_bounds = array<i64: 8, 16>}, {transform_indices = @transform_1, window_bounds = array<i64: 8, 1>}, {pipeline_mode = #tpu.pipeline_mode<synchronous>, transform_indices = @transform_2, window_bounds = array<i64: 1, 16>}, {transform_indices = @transform_3, window_bounds = array<i64: 8, 1>}]} {
    %c0 = arith.constant 0 : index
    %c0_0 = arith.constant 0 : index
    %0 = vector.load %arg1[%c0, %c0_0] : memref<8x16xf32, #tpu.memory_space<vmem>>, vector<8x16xf32>
    %c0_1 = arith.constant 0 : index
    %c0_2 = arith.constant 0 : index
    %1 = vector.load %arg2[%c0_1, %c0_2] : memref<8x1xi32, #tpu.memory_space<vmem>>, vector<8x1xi32>
    %c0_3 = arith.constant 0 : index
    %c0_4 = arith.constant 0 : index
    %2 = vector.load %arg3[%c0_3, %c0_4] : memref<1x16xf32, #tpu.memory_space<vmem>>, vector<1x16xf32>
    %cst = arith.constant dense<0xFF800000> : vector<8xf32>
    %3 = vector.multi_reduction <maximumf>, %0, %cst [1] : vector<8x16xf32> to vector<8xf32>
    %4 = vector.shape_cast %3 : vector<8xf32> to vector<8x1xf32>
    %5 = vector.broadcast %4 : vector<8x1xf32> to vector<8x16xf32>
    %6 = arith.subf %0, %5 : vector<8x16xf32>
    %7 = math.exp %6 : vector<8x16xf32>
    %cst_5 = arith.constant dense<0.000000e+00> : vector<8xf32>
    %8 = vector.multi_reduction <add>, %7, %cst_5 [1] : vector<8x16xf32> to vector<8xf32>
    %9 = vector.shape_cast %8 : vector<8xf32> to vector<8x1xf32>
    %10 = math.log %9 : vector<8x1xf32>
    %11 = vector.broadcast %10 : vector<8x1xf32> to vector<8x16xf32>
    %12 = arith.subf %6, %11 : vector<8x16xf32>
    %13 = tpu.iota {dimensions = array<i32: 1>} : vector<8x16xi32>
    %14 = vector.broadcast %1 : vector<8x1xi32> to vector<8x16xi32>
    %15 = arith.cmpi eq, %13, %14 : vector<8x16xi32>
    %16 = vector.broadcast %2 : vector<1x16xf32> to vector<8x16xf32>
    %17 = arith.mulf %16, %12 : vector<8x16xf32>
    %cst_6 = arith.constant 0.000000e+00 : f32
    %18 = vector.broadcast %cst_6 : f32 to vector<8x16xf32>
    %19 = arith.select %15, %17, %18 : vector<8x16xi1>, vector<8x16xf32>
    %cst_7 = arith.constant dense<0.000000e+00> : vector<8xf32>
    %20 = vector.multi_reduction <add>, %19, %cst_7 [1] : vector<8x16xf32> to vector<8xf32>
    %21 = vector.shape_cast %20 : vector<8xf32> to vector<8x1xf32>
    %cst_8 = arith.constant 0.000000e+00 : f32
    %22 = vector.broadcast %cst_8 : f32 to vector<8x1xf32>
    %23 = arith.subf %22, %21 : vector<8x1xf32>
    %c0_9 = arith.constant 0 : index
    %c0_10 = arith.constant 0 : index
    %24 = vector.load %arg4[%c0_9, %c0_10] : memref<8x1xf32, #tpu.memory_space<vmem>>, vector<8x1xf32>
    tpu.vector_store %arg4[%c0_9, %c0_10], %23 {strides = array<i32>} : memref<8x1xf32, #tpu.memory_space<vmem>>, vector<8x1xf32>,
    return
  }
  func.func @transform_0(%arg0: i32) -> (i32, i32) {
    %c0_i32 = arith.constant 0 : i32
    %c0_i32_0 = arith.constant 0 : i32
    return %arg0, %c0_i32 : i32, i32
  }
  func.func @transform_1(%arg0: i32) -> (i32, i32) {
    %c0_i32 = arith.constant 0 : i32
    %c0_i32_0 = arith.constant 0 : i32
    return %arg0, %c0_i32 : i32, i32
  }
  func.func @transform_2(%arg0: i32) -> (i32, i32) {
    %c0_i32 = arith.constant 0 : i32
    %c0_i32_0 = arith.constant 0 : i32
    %c0_i32_1 = arith.constant 0 : i32
    return %c0_i32, %c0_i32_0 : i32, i32
  }
  func.func @transform_3(%arg0: i32) -> (i32, i32) {
    %c0_i32 = arith.constant 0 : i32
    %c0_i32_0 = arith.constant 0 : i32
    return %arg0, %c0_i32 : i32, i32
  }
}

</mosaic_0001>

<llo_original>
// kernel: tpu_custom_call.1
$region0: #{tpu_custom_call.1}
  #allocation0 [shape = 'u32[]', space=smem, size = 0x4, offset = 0x4, fixed_abs, tag = 'smem constant byte address 0x4 - core index']
  #allocation1 [shape = 'u32[144,128]{1,0:T(1,128)}', space=vmem, size = 0x12000, scoped, tag = 'internal scratch']
  %s0 = inlined_call_operand.vmem [shape: f32[8,16], index: 0, kind: input, shape index: {}]
  %s1 = inlined_call_operand.vmem [shape: s32[8,1], index: 1, kind: input, shape index: {}]
  %s2 = inlined_call_operand.vmem [shape: f32[1,16], index: 2, kind: input, shape index: {}]
  %s3 = inlined_call_operand.vmem [shape: f32[8,1], index: 3, kind: output, shape index: {}]
  %s4 = sld [smem:[#allocation0]]
  $region22: #{tpu_custom_call.1} parent=0
    _
  %s6 = ssub.s32 1, %s4
  %s7 = scalar_select 0, %s6, %s4
  // Predicated region
  $region2: #{tpu_custom_call.1} parent=0 // pred_check
    _
  $region3: #{tpu_custom_call.1} parent=0 // pred_check_branch
    %9 = sbr.rel (0) target = $region5
  $region4: #{tpu_custom_call.1} parent=0 // pred_region
    _
  $region5: #{tpu_custom_call.1} parent=0 // pred_fallthru
    _
  // Predicated region
  $region6: #{tpu_custom_call.1} parent=0 // pred_check
    _
  $region7: #{tpu_custom_call.1} parent=0 // pred_check_branch
    %11 = sbr.rel (0) target = $region9
  $region8: #{tpu_custom_call.1} parent=0 // pred_region
    _
  $region9: #{tpu_custom_call.1} parent=0 // pred_fallthru
    _
  // Predicated region
  $region10: #{tpu_custom_call.1} parent=0 // pred_check
    _
  $region11: #{tpu_custom_call.1} parent=0 // pred_check_branch
    %13 = sbr.rel (0) target = $region13
  $region12: #{tpu_custom_call.1} parent=0 // pred_region
    _
  $region13: #{tpu_custom_call.1} parent=0 // pred_fallthru
    _
  %v14 = vld [vmem:[%s0] sm:$0xff]
  %v15 = vld [vmem:[%s1] sm:$0xff]
  %v16 = vld [vmem:[%s2] sm:$0x1]
  %vm17 = vcmask 130048
  %v18 = vsel %vm17, %v14, -inf
  %19 = vmax.xlane.f32.xlu0 %v18
  %v20 = vpop.xlane.xlu0 %19
  %v21 = vsub.f32 %v14, %v20
  %v22 = vmul.f32 %v21, 1.442695
  %v23 = vpow.pop %v22
  %v24 = vsel %vm17, %v23, 0.0
  %25 = vadd.xlane.f32.xlu0 %v24
  %v26 = vpop.xlane.xlu0 %25
  %v27 = vlog2.pop %v26
  %v28 = vmul.f32 %v27, 0.6931472
  %v29 = vsub.f32 %v21, %v28
  %v30 = vlaneseq
  %v31 = vand.u32 %v30, 127
  %32 = vset.pattern.permute.xlu0 0
  %33 = vperm.xlu0 %32, %v15
  %v34 = vpop.permute.xlu0 %33
  %vm35 = vcmp.eq.s32.totalorder %v31, %v34
  %v37 = vlaneseq
  %v38 = vshrl.u32 %v37, 7
  %v39 = vsub.s32 0, %v38
  %v40 = vrot.slane %v16, %v39
  %v42 = vmul.f32 %v40, %v29
  %v43 = vsel %vm35, %v42, 0.0
  %v44 = vsel %vm17, %v43, 0.0
  %45 = vadd.xlane.f32.xlu0 %v44
  %v46 = vpop.xlane.xlu0 %45
  %v47 = vsub.f32 0.0, %v46
  %vm48 = vcmask 7168
  %49 = vst.msk [vmem:[%s3] sm:$0xff] %vm48, %v47
  // Predicated region
  $region14: #{tpu_custom_call.1} parent=0 // pred_check
    _
  $region15: #{tpu_custom_call.1} parent=0 // pred_check_branch
    %51 = sbr.rel (0) target = $region17
  $region16: #{tpu_custom_call.1} parent=0 // pred_region
    _
  $region17: #{tpu_custom_call.1} parent=0 // pred_fallthru
    _
  // Predicated region
  $region18: #{tpu_custom_call.1} parent=0 // pred_check
    _
  $region19: #{tpu_custom_call.1} parent=0 // pred_check_branch
    %53 = sbr.rel (0) target = $region21
  $region20: #{tpu_custom_call.1} parent=0 // pred_region
    _
  $region21: #{tpu_custom_call.1} parent=0 // pred_fallthru
    _

</llo_original>
